<compile_context>
chip_gen: v7x
topology: tpu7x:2x2x1
jax: 0.10.0
libtpu: 0.0.40
codegen_flags: <defaults>
</compile_context>

<pallas_src>
import functools

import jax
import jax.numpy as jnp
from jax.experimental import pallas as pl
from jax.experimental.pallas import tpu as pltpu


def _round_up(x, m):
    return ((x + m - 1) // m) * m


def _pick_tiles(B, L, DEC, E2):
    """Pick (bm, tl, n_l, L_pad) from a generation-safe VMEM budget.

    bm: batch rows per block (multiple of 16, or == B for tiny batches).
    tl: src_len chunk per grid step (multiple of 128; long sequences stream).
    """
    lane_dec = max(_round_up(DEC, 128), 128)      # DEC gets lane-padded in f32 temps
    budget = 16 * 1024 * 1024                     # modeled target, well under the limit
    fixed = 4 * (DEC * DEC + E2 * DEC) * 2        # double-buffered bf16 weights (+slack)

    cap = _round_up(max(L, 1), 128)
    tl, bm = min(128, cap), 16
    for cand in (min(512, cap), min(256, cap), min(128, cap)):
        n_l = pl.cdiv(L, cand)
        per_row = (2 * cand * E2 * 2              # double-buffered bf16 enc chunk
                   + 2 * cand * lane_dec * 4      # enc_proj + energy f32 (lane padded)
                   + 4 * n_l * cand * 4)          # resident logits + softmax temps
        rows = max(0, budget - fixed) // per_row // 16 * 16
        if rows >= 16:
            tl, bm = cand, rows
            break
        tl, bm = cand, max(int(rows), 16)
    bm = int(max(16, min(512, bm)))

    if B <= 16:
        bm = B                                    # tiny batch: one full-batch tile
    else:
        # keep >= 2 steps on the parallel axis so both v7x TensorCores get work
        bm = min(bm, max(16, _round_up(pl.cdiv(B, 2), 16)))

    n_l = pl.cdiv(L, tl)
    return bm, tl, n_l, n_l * tl


def _attention_kernel(s_ref, enc_ref, wa_s_ref, wa_e_ref, v_ref, out_ref, *, src_len):
    # s_ref:    (bm, DEC)        bf16
    # enc_ref:  (bm, tl, E2)     bf16, contiguous [B, L, E2] slab
    # wa_s_ref: (DEC, DEC)       bf16  = attn.weight[:, :DEC].T
    # wa_e_ref: (E2, DEC)        bf16  = attn.weight[:, DEC:].T
    # v_ref:    (1, DEC)         f32   = v.weight
    # out_ref:  (n_l, bm, tl)    f32, resident across the L-chunk grid axis
    l = pl.program_id(1)
    n_l = pl.num_programs(1)
    bm, tl, E2 = enc_ref.shape
    DEC = s_ref.shape[1]

    # s path: one small (bm, DEC) x (DEC, DEC) GEMM per grid step (tiny vs enc path).
    s_proj = jnp.dot(s_ref[...], wa_s_ref[...],
                     preferred_element_type=jnp.float32)            # (bm, DEC)

    # enc path: (bm*tl, E2) x (E2, DEC) bf16 GEMM on the MXU, f32 accumulation.
    enc2 = enc_ref[...].reshape(bm * tl, E2)
    enc_proj = jnp.dot(enc2, wa_e_ref[...],
                       preferred_element_type=jnp.float32)          # (bm*tl, DEC)
    enc_proj = enc_proj.reshape(bm, tl, DEC)

    # tanh kept in f32 (v5e has no bf16 EUP); energy is bounded in [-1, 1].
    energy = jnp.tanh(enc_proj + s_proj[:, None, :])                # (bm, tl, DEC)

    # v projection: VPU multiply + lane (XLU) reduce; avoids an N=1 MXU matmul.
    logits = jnp.sum(energy * v_ref[...][None, :, :], axis=-1)      # (bm, tl)

    # Stash this chunk of raw logits in the resident output block (leading-dim index).
    out_ref[l] = logits.astype(out_ref.dtype)

    # Final L chunk: masked, numerically stable softmax over the whole src_len.
    @pl.when(l == n_l - 1)
    def _():
        att = out_ref[...]                                          # (n_l, bm, tl)
        li = jax.lax.broadcasted_iota(jnp.int32, att.shape, 0)
        ti = jax.lax.broadcasted_iota(jnp.int32, att.shape, 2)
        valid = (li * tl + ti) < src_len                            # global column < L
        neg = jnp.finfo(jnp.float32).min
        att = jnp.where(valid, att, neg)                            # mask pad/garbage cols
        m = jnp.max(att, axis=2, keepdims=True)
        m = jnp.max(m, axis=0, keepdims=True)                       # (1, bm, 1)
        e = jnp.where(valid, jnp.exp(att - m), 0.0)
        denom = jnp.sum(e, axis=2, keepdims=True)
        denom = jnp.sum(denom, axis=0, keepdims=True)               # (1, bm, 1)
        inv = pl.reciprocal(denom, approx=False)                    # exact: rows sum to 1
        out_ref[...] = (e * inv).astype(out_ref.dtype)


def attention_forward(s, enc_output, wa, v):
    """s: [B, DEC], enc_output: [L, B, E2] (PyTorch convention),
    wa: [DEC, DEC+E2] = nn.Linear(E2+DEC, DEC, bias=False).weight,
    v:  [1, DEC]      = nn.Linear(DEC, 1, bias=False).weight.
    Returns softmax attention weights [B, L] (float32)."""
    L, B, E2 = enc_output.shape
    DEC = s.shape[1]

    # Split the fused attn weight: cat((s, enc), dim=2) means the first DEC input
    # columns act on s and the remaining E2 columns act on enc_output.
    wa_s = wa[:, :DEC].T.astype(jnp.bfloat16)              # (DEC, DEC)
    wa_e = wa[:, DEC:].T.astype(jnp.bfloat16)              # (E2, DEC)
    v_f32 = v.astype(jnp.float32)                          # (1, DEC), VPU path stays f32

    # Contiguous per-block DMA + halved HBM traffic on the dominant tensor.
    enc_ble = jnp.transpose(enc_output, (1, 0, 2)).astype(jnp.bfloat16)   # (B, L, E2)
    s_bf16 = s.astype(jnp.bfloat16)

    bm, tl, n_l, L_pad = _pick_tiles(B, L, DEC, E2)
    n_b = pl.cdiv(B, bm)

    flops = 2 * B * L * E2 * DEC + 2 * B * DEC * DEC * n_l + 2 * B * L * DEC
    transcendentals = B * L * DEC + B * L_pad
    bytes_accessed = (B * L * E2 * 2 + B * DEC * 2
                      + (DEC * DEC + E2 * DEC) * 2 + DEC * 4
                      + n_l * B * tl * 4)

    out3 = pl.pallas_call(
        functools.partial(_attention_kernel, src_len=L),
        out_shape=jax.ShapeDtypeStruct((n_l, B, tl), jnp.float32),
        grid=(n_b, n_l),
        in_specs=[
            pl.BlockSpec((bm, DEC), lambda i, l: (i, 0)),
            pl.BlockSpec((bm, tl, E2), lambda i, l: (i, l, 0)),
            pl.BlockSpec((DEC, DEC), lambda i, l: (0, 0)),
            pl.BlockSpec((E2, DEC), lambda i, l: (0, 0)),
            pl.BlockSpec((1, DEC), lambda i, l: (0, 0)),
        ],
        out_specs=pl.BlockSpec((n_l, bm, tl), lambda i, l: (0, i, 0)),
        compiler_params=pltpu.CompilerParams(
            dimension_semantics=("parallel", "arbitrary"),
            vmem_limit_bytes=40 * 1024 * 1024,
        ),
        cost_estimate=pl.CostEstimate(
            flops=flops,
            transcendentals=transcendentals,
            bytes_accessed=bytes_accessed,
        ),
    )(s_bf16, enc_ble, wa_s, wa_e, v_f32)

    # (n_l, B, tl) -> (B, L_pad) -> drop lane padding.  This reshape/slice is on the
    # tiny attention-weight tensor, not on the dominant enc traffic.
    out = jnp.transpose(out3, (1, 0, 2)).reshape(B, L_pad)[:, :L]
    return out


def _reference(s, enc_output, wa, v):
    """Plain-JAX (f32) mirror of the PyTorch forward, for a sanity check."""
    L = enc_output.shape[0]
    s_rep = jnp.repeat(s[:, None, :], L, axis=1)            # (B, L, DEC)
    enc_b = jnp.transpose(enc_output, (1, 0, 2))            # (B, L, E2)
    x = jnp.concatenate([s_rep, enc_b], axis=2)
    energy = jnp.tanh(jnp.einsum("blc,dc->bld", x, wa))
    att = jnp.einsum("bld,od->blo", energy, v)[..., 0]
    return jax.nn.softmax(att, axis=1)


if __name__ == "__main__":
    # Module config (small): enc_hid_dim=16, dec_hid_dim=32
    enc_hid_dim = 16
    dec_hid_dim = 32
    batch = 2
    src_len = 8
    e2 = enc_hid_dim * 2

    key = jax.random.PRNGKey(0)
    k_s, k_enc, k_wa, k_v = jax.random.split(key, 4)

    s = jax.random.normal(k_s, (batch, dec_hid_dim), dtype=jnp.float32)
    enc_output = jax.random.normal(k_enc, (src_len, batch, e2), dtype=jnp.float32)

    # nn.Linear(enc_hid*2 + dec_hid, dec_hid, bias=False).weight -> [dec_hid, dec_hid+e2]
    wa = 0.1 * jax.random.normal(k_wa, (dec_hid_dim, e2 + dec_hid_dim), dtype=jnp.float32)
    # nn.Linear(dec_hid, 1, bias=False).weight -> [1, dec_hid]
    v = 0.1 * jax.random.normal(k_v, (1, dec_hid_dim), dtype=jnp.float32)

    out = attention_forward(s, enc_output, wa, v)
    out = jax.block_until_ready(out)

    ref = _reference(s, enc_output, wa, v)
    assert out.shape == (batch, src_len)
    # Tolerance reflects bf16 matmul operands (f32 accumulation) vs the f32 reference.
    assert jnp.allclose(out, ref, atol=5e-3, rtol=5e-3)
    # Exact reciprocal in the softmax -> rows sum to 1 to f32 precision.
    assert jnp.allclose(jnp.sum(out, axis=1), 1.0, atol=1e-5)

    print("KERNEL_OK")
</pallas_src>

<mosaic_0001>
module attributes {stable_mosaic.version = 11 : i64} {
  func.func @_attention_kernel(%arg0: i32, %arg1: i32, %arg2: memref<2x32xbf16, #tpu.memory_space<vmem>>, %arg3: memref<2x128x32xbf16, #tpu.memory_space<vmem>>, %arg4: memref<32x32xbf16, #tpu.memory_space<vmem>>, %arg5: memref<32x32xbf16, #tpu.memory_space<vmem>>, %arg6: memref<1x32xf32, #tpu.memory_space<vmem>>, %arg7: memref<1x2x128xf32, #tpu.memory_space<vmem>>) attributes {dimension_semantics = [#tpu.dimension_semantics<parallel>, #tpu.dimension_semantics<arbitrary>], iteration_bounds = array<i64: 1, 1>, scalar_prefetch = 0 : i64, scratch_operands = 0 : i64, tpu.core_type = #tpu.core_type<tc>, window_params = [{transform_indices = @transform_0, window_bounds = array<i64: 2, 32>}, {transform_indices = @transform_1, window_bounds = array<i64: 2, 128, 32>}, {pipeline_mode = #tpu.pipeline_mode<synchronous>, transform_indices = @transform_2, window_bounds = array<i64: 32, 32>}, {pipeline_mode = #tpu.pipeline_mode<synchronous>, transform_indices = @transform_3, window_bounds = array<i64: 32, 32>}, {pipeline_mode = #tpu.pipeline_mode<synchronous>, transform_indices = @transform_4, window_bounds = array<i64: 1, 32>}, {transform_indices = @transform_5, window_bounds = array<i64: 1, 2, 128>}]} {
    %c0 = arith.constant 0 : index
    %c0_0 = arith.constant 0 : index
    %0 = vector.load %arg2[%c0, %c0_0] : memref<2x32xbf16, #tpu.memory_space<vmem>>, vector<2x32xbf16>
    %c0_1 = arith.constant 0 : index
    %c0_2 = arith.constant 0 : index
    %1 = vector.load %arg4[%c0_1, %c0_2] : memref<32x32xbf16, #tpu.memory_space<vmem>>, vector<32x32xbf16>
    %cst = arith.constant dense<0.000000e+00> : vector<2x32xf32>
    %2 = tpu.matmul %0, %1, %cst {dimension_numbers = #tpu.dot_dimension_numbers<[1], [0], [0], [1], [0, 0, 1, 1], [], []>} : vector<2x32xbf16>, vector<32x32xbf16>, vector<2x32xf32> -> vector<2x32xf32>
    %c0_3 = arith.constant 0 : index
    %c0_4 = arith.constant 0 : index
    %c0_5 = arith.constant 0 : index
    %3 = vector.load %arg3[%c0_3, %c0_4, %c0_5] : memref<2x128x32xbf16, #tpu.memory_space<vmem>>, vector<2x128x32xbf16>
    %4 = vector.shape_cast %3 : vector<2x128x32xbf16> to vector<256x32xbf16>
    %c0_6 = arith.constant 0 : index
    %c0_7 = arith.constant 0 : index
    %5 = vector.load %arg5[%c0_6, %c0_7] : memref<32x32xbf16, #tpu.memory_space<vmem>>, vector<32x32xbf16>
    %cst_8 = arith.constant dense<0.000000e+00> : vector<256x32xf32>
    %6 = tpu.matmul %4, %5, %cst_8 {dimension_numbers = #tpu.dot_dimension_numbers<[1], [0], [0], [1], [0, 0, 1, 1], [], []>} : vector<256x32xbf16>, vector<32x32xbf16>, vector<256x32xf32> -> vector<256x32xf32>
    %7 = vector.shape_cast %6 : vector<256x32xf32> to vector<2x128x32xf32>
    %8 = vector.shape_cast %2 : vector<2x32xf32> to vector<2x1x32xf32>
    %9 = vector.broadcast %8 : vector<2x1x32xf32> to vector<2x128x32xf32>
    %10 = arith.addf %7, %9 : vector<2x128x32xf32>
    %11 = math.tanh %10 : vector<2x128x32xf32>
    %c0_9 = arith.constant 0 : index
    %c0_10 = arith.constant 0 : index
    %12 = vector.load %arg6[%c0_9, %c0_10] : memref<1x32xf32, #tpu.memory_space<vmem>>, vector<1x32xf32>
    %13 = vector.shape_cast %12 : vector<1x32xf32> to vector<1x1x32xf32>
    %14 = vector.broadcast %13 : vector<1x1x32xf32> to vector<2x128x32xf32>
    %15 = arith.mulf %11, %14 : vector<2x128x32xf32>
    %cst_11 = arith.constant dense<0.000000e+00> : vector<2x128xf32>
    %16 = vector.multi_reduction <add>, %15, %cst_11 [2] : vector<2x128x32xf32> to vector<2x128xf32>
    %17 = arith.index_cast %arg1 : i32 to index
    %c0_12 = arith.constant 0 : index
    %c0_13 = arith.constant 0 : index
    %18 = vector.load %arg7[%17, %c0_12, %c0_13] : memref<1x2x128xf32, #tpu.memory_space<vmem>>, vector<1x2x128xf32>
    %19 = vector.shape_cast %18 : vector<1x2x128xf32> to vector<2x128xf32>
    %20 = vector.shape_cast %16 : vector<2x128xf32> to vector<1x2x128xf32>
    tpu.vector_store %arg7[%17, %c0_12, %c0_13], %20 {strides = array<i32>} : memref<1x2x128xf32, #tpu.memory_space<vmem>>, vector<1x2x128xf32>,
    %c0_i32 = arith.constant 0 : i32
    %21 = arith.cmpi eq, %arg1, %c0_i32 : i32
    %22 = arith.extui %21 : i1 to i32
    %c0_i32_14 = arith.constant 0 : i32
    %23 = arith.cmpi ne, %22, %c0_i32_14 : i32
    scf.if %23 {
      %c0_15 = arith.constant 0 : index
      %c0_16 = arith.constant 0 : index
      %c0_17 = arith.constant 0 : index
      %24 = vector.load %arg7[%c0_15, %c0_16, %c0_17] : memref<1x2x128xf32, #tpu.memory_space<vmem>>, vector<1x2x128xf32>
      %25 = tpu.iota {dimensions = array<i32: 0>} : vector<1x2x128xi32>
      %26 = tpu.iota {dimensions = array<i32: 2>} : vector<1x2x128xi32>
      %c128_i32 = arith.constant 128 : i32
      %27 = vector.broadcast %c128_i32 : i32 to vector<1x2x128xi32>
      %28 = arith.muli %25, %27 : vector<1x2x128xi32>
      %29 = arith.addi %28, %26 : vector<1x2x128xi32>
      %c8_i32 = arith.constant 8 : i32
      %30 = vector.broadcast %c8_i32 : i32 to vector<1x2x128xi32>
      %31 = arith.cmpi slt, %29, %30 : vector<1x2x128xi32>
      %cst_18 = arith.constant -3.40282347E+38 : f32
      %32 = vector.broadcast %cst_18 : f32 to vector<1x2x128xf32>
      %33 = arith.select %31, %24, %32 : vector<1x2x128xi1>, vector<1x2x128xf32>
      %cst_19 = arith.constant dense<0xFF800000> : vector<1x2xf32>
      %34 = vector.multi_reduction <maximumf>, %33, %cst_19 [2] : vector<1x2x128xf32> to vector<1x2xf32>
      %35 = vector.shape_cast %34 : vector<1x2xf32> to vector<1x2x1xf32>
      %cst_20 = arith.constant dense<0xFF800000> : vector<2x1xf32>
      %36 = vector.multi_reduction <maximumf>, %35, %cst_20 [0] : vector<1x2x1xf32> to vector<2x1xf32>
      %37 = vector.shape_cast %36 : vector<2x1xf32> to vector<1x2x1xf32>
      %38 = vector.broadcast %37 : vector<1x2x1xf32> to vector<1x2x128xf32>
      %39 = arith.subf %33, %38 : vector<1x2x128xf32>
      %40 = math.exp %39 : vector<1x2x128xf32>
      %cst_21 = arith.constant 0.000000e+00 : f32
      %41 = vector.broadcast %cst_21 : f32 to vector<1x2x128xf32>
      %42 = arith.select %31, %40, %41 : vector<1x2x128xi1>, vector<1x2x128xf32>
      %cst_22 = arith.constant dense<0.000000e+00> : vector<1x2xf32>
      %43 = vector.multi_reduction <add>, %42, %cst_22 [2] : vector<1x2x128xf32> to vector<1x2xf32>
      %44 = vector.shape_cast %43 : vector<1x2xf32> to vector<1x2x1xf32>
      %cst_23 = arith.constant dense<0.000000e+00> : vector<2x1xf32>
      %45 = vector.multi_reduction <add>, %44, %cst_23 [0] : vector<1x2x1xf32> to vector<2x1xf32>
      %46 = vector.shape_cast %45 : vector<2x1xf32> to vector<1x2x1xf32>
      %47 = tpu.reciprocal %46 : vector<1x2x1xf32> -> vector<1x2x1xf32>
      %48 = vector.broadcast %47 : vector<1x2x1xf32> to vector<1x2x128xf32>
      %49 = arith.mulf %42, %48 : vector<1x2x128xf32>
      %c0_24 = arith.constant 0 : index
      %c0_25 = arith.constant 0 : index
      %c0_26 = arith.constant 0 : index
      %50 = vector.load %arg7[%c0_24, %c0_25, %c0_26] : memref<1x2x128xf32, #tpu.memory_space<vmem>>, vector<1x2x128xf32>
      tpu.vector_store %arg7[%c0_24, %c0_25, %c0_26], %49 {strides = array<i32>} : memref<1x2x128xf32, #tpu.memory_space<vmem>>, vector<1x2x128xf32>,
    } else {
    }
    return
  }
  func.func @transform_0(%arg0: i32, %arg1: i32) -> (i32, i32) {
    %c0_i32 = arith.constant 0 : i32
    %c0_i32_0 = arith.constant 0 : i32
    return %arg0, %c0_i32 : i32, i32
  }
  func.func @transform_1(%arg0: i32, %arg1: i32) -> (i32, i32, i32) {
    %c0_i32 = arith.constant 0 : i32
    %c0_i32_0 = arith.constant 0 : i32
    return %arg0, %arg1, %c0_i32 : i32, i32, i32
  }
  func.func @transform_2(%arg0: i32, %arg1: i32) -> (i32, i32) {
    %c0_i32 = arith.constant 0 : i32
    %c0_i32_0 = arith.constant 0 : i32
    %c0_i32_1 = arith.constant 0 : i32
    return %c0_i32, %c0_i32_0 : i32, i32
  }
  func.func @transform_3(%arg0: i32, %arg1: i32) -> (i32, i32) {
    %c0_i32 = arith.constant 0 : i32
    %c0_i32_0 = arith.constant 0 : i32
    %c0_i32_1 = arith.constant 0 : i32
    return %c0_i32, %c0_i32_0 : i32, i32
  }
  func.func @transform_4(%arg0: i32, %arg1: i32) -> (i32, i32) {
    %c0_i32 = arith.constant 0 : i32
    %c0_i32_0 = arith.constant 0 : i32
    %c0_i32_1 = arith.constant 0 : i32
    return %c0_i32, %c0_i32_0 : i32, i32
  }
  func.func @transform_5(%arg0: i32, %arg1: i32) -> (i32, i32, i32) {
    %c0_i32 = arith.constant 0 : i32
    %c0_i32_0 = arith.constant 0 : i32
    %c0_i32_1 = arith.constant 0 : i32
    return %c0_i32, %arg0, %c0_i32_0 : i32, i32, i32
  }
}

</mosaic_0001>

<llo_original>
// kernel: tpu_custom_call.1
$region0: #{tpu_custom_call.1}
  #allocation0 [shape = 'u32[]', space=smem, size = 0x4, offset = 0x4, fixed_abs, tag = 'smem constant byte address 0x4 - core index']
  #allocation1 [shape = 'u32[144,128]{1,0:T(1,128)}', space=vmem, size = 0x12000, scoped, tag = 'internal scratch']
  #allocation11 [shape = 's32[]', space=sflag, size = 0x4, offset = 0, fixed_abs, tag = 'sflag constant byte address 0x0 - dummy sync flag']
  %s0 = inlined_call_operand.hbm [shape: bf16[2,32], index: 0, kind: input, shape index: {}]
  %s1 = inlined_call_operand.hbm [shape: bf16[2,8,32], index: 1, kind: input, shape index: {}]
  %s2 = inlined_call_operand.hbm [shape: bf16[32,32], index: 2, kind: input, shape index: {}]
  %s3 = inlined_call_operand.hbm [shape: bf16[32,32], index: 3, kind: input, shape index: {}]
  %s4 = inlined_call_operand.vmem [shape: f32[1,32], index: 4, kind: input, shape index: {}]
  %s5 = inlined_call_operand.hbm [shape: f32[1,2,128], index: 5, kind: output, shape index: {}]
  %s6 = sld [smem:[#allocation0]]
  $region50: #{tpu_custom_call.1} parent=0
    _
  %s8 = ssub.s32 1, %s6
  %s9 = scalar_select 0, %s8, %s6
  $region1: #{tpu_custom_call.1} parent=0
    #allocation2 [shape = 'u8[512]{0}', space=vmem, size = 0x400, scoped, tag = 'input window, operand 0, single buffered']
    #allocation3 [shape = 's32[1]{0}', space=sflag, size = 0x4, scoped, tag = 'scoped memory for tpu_custom_call.1']
    #allocation4 [shape = 's32[1]{0}', space=sflag, size = 0x4, scoped, tag = 'scoped memory for tpu_custom_call.1']
    #allocation5 [shape = 'u8[65536]{0}', space=vmem, size = 0x10000, scoped, tag = 'input window, operand 1, single buffered']
    #allocation6 [shape = 's32[1]{0}', space=sflag, size = 0x4, scoped, tag = 'scoped memory for tpu_custom_call.1']
    #allocation7 [shape = 'u8[8192]{0}', space=vmem, size = 0x2000, scoped, tag = 'input window, operand 2, single buffered']
    #allocation8 [shape = 'u8[8192]{0}', space=vmem, size = 0x2000, scoped, tag = 'input window, operand 3, single buffered']
    #allocation9 [shape = 's32[1]{0}', space=sflag, size = 0x4, scoped, tag = 'scoped memory for tpu_custom_call.1']
    #allocation10 [shape = 'u8[1024]{0}', space=vmem, size = 0x400, scoped, tag = 'output window, operand 0, single buffered']
    %10 = vsyncpa [#allocation3], 0
    %11 = vsyncpa [#allocation6], 0
    %12 = vsyncpa [#allocation9], 0
    %13 = vsyncpa [#allocation4], 0
    // Predicated region
    $region2: #{tpu_custom_call.1} parent=1 // pred_check
      _
    $region3: #{tpu_custom_call.1} parent=1 // pred_check_branch
      %15 = sbr.rel (0) target = $region5
    $region4: #{tpu_custom_call.1} parent=1 // pred_region
      %s17 = ssub.s32 16, 16
      %18 = vsyncadd [#allocation3], %s17
      %s20 = sshll.u32 [#allocation2], 4
      %s21 = int_to_ptr.vmem [resolvable:$true] %s20
      %23 = dma.hbm_to_vmem [thread:$0]  %s0, 16, %s21, [#allocation3]
    $region5: #{tpu_custom_call.1} parent=1 // pred_fallthru
      _
    // Predicated region
    $region6: #{tpu_custom_call.1} parent=1 // pred_check
      _
    $region7: #{tpu_custom_call.1} parent=1 // pred_check_branch
      %25 = sbr.rel (0) target = $region9
    $region8: #{tpu_custom_call.1} parent=1 // pred_region
      #allocation12 [shape = 'u32[6]{0}', space=smem, size = 0x18, scoped, tag = 'DMA stride descriptor']
      %s27 = ssub.s32 2048, 128
      %28 = vsyncadd [#allocation6], %s27
      %s30 = sshll.u32 1, 14
      %s31 = sxor.u32 4294967295, %s30
      %s33 = sld [smem:[#allocation0]]
      %s34 = sadd.s32 2, %s33
      %s36 = sshll.u32 7, 26
      %s37 = sxor.u32 4294967295, %s36
      %s38 = sand.u32 0, %s37
      %s39 = sshll.u32 %s34, 26
      %s40 = sor.u32 %s38, %s39
      %s41 = sshll.u32 [#allocation5], 4
      %s42 = int_to_ptr.vmem [resolvable:$true] %s41
      %48 = sst [smem:[#allocation12]] 64
      %s49 = scalar_lea.smem [#allocation12], 1
      %50 = sst [smem:[%s49]] 1024
      %s51 = scalar_lea.smem [#allocation12], 2
      %52 = sst [smem:[%s51]] 1
      %s53 = scalar_lea.smem [#allocation12], 3
      %54 = sst [smem:[%s53]] 64
      %s55 = scalar_lea.smem [#allocation12], 4
      %56 = sst [smem:[%s55]] 64
      %s57 = scalar_lea.smem [#allocation12], 5
      %58 = sst [smem:[%s57]] 4
      %60 = dma.general %s1, 128, %s42, [#allocation6], [#allocation11], [#allocation12], %s40, 0
    $region9: #{tpu_custom_call.1} parent=1 // pred_fallthru
      _
    // Predicated region
    $region10: #{tpu_custom_call.1} parent=1 // pred_check
      _
    $region11: #{tpu_custom_call.1} parent=1 // pred_check_branch
      %62 = sbr.rel (0) target = $region13
    $region12: #{tpu_custom_call.1} parent=1 // pred_region
      %s64 = ssub.s32 256, 256
      %65 = vsyncadd [#allocation6], %s64
      %s66 = sshll.u32 [#allocation7], 4
      %s67 = int_to_ptr.vmem [resolvable:$true] %s66
      %72 = dma.hbm_to_vmem [thread:$0]  %s2, 256, %s67, [#allocation6], 64, 64, 4
    $region13: #{tpu_custom_call.1} parent=1 // pred_fallthru
      _
    // Predicated region
    $region14: #{tpu_custom_call.1} parent=1 // pred_check
      _
    $region15: #{tpu_custom_call.1} parent=1 // pred_check_branch
      %74 = sbr.rel (0) target = $region17
    $region16: #{tpu_custom_call.1} parent=1 // pred_region
      %s76 = ssub.s32 256, 256
      %77 = vsyncadd [#allocation9], %s76
      %s78 = sshll.u32 [#allocation8], 4
      %s79 = int_to_ptr.vmem [resolvable:$true] %s78
      %84 = dma.hbm_to_vmem [thread:$0]  %s3, 256, %s79, [#allocation9], 64, 64, 4
    $region17: #{tpu_custom_call.1} parent=1 // pred_fallthru
      _
    // Predicated region
    $region18: #{tpu_custom_call.1} parent=1 // pred_check
      _
    $region19: #{tpu_custom_call.1} parent=1 // pred_check_branch
      %86 = sbr.rel (0) target = $region21
    $region20: #{tpu_custom_call.1} parent=1 // pred_region
      _
    $region21: #{tpu_custom_call.1} parent=1 // pred_fallthru
      _
    // Predicated region
    $region22: #{tpu_custom_call.1} parent=1 // pred_check
      _
    $region23: #{tpu_custom_call.1} parent=1 // pred_check_branch
      %88 = sbr.rel (0) target = $region25
    $region24: #{tpu_custom_call.1} parent=1 // pred_region
      %89 = dma.done [#allocation3], 16
    $region25: #{tpu_custom_call.1} parent=1 // pred_fallthru
      _
    // Predicated region
    $region26: #{tpu_custom_call.1} parent=1 // pred_check
      _
    $region27: #{tpu_custom_call.1} parent=1 // pred_check_branch
      %91 = sbr.rel (0) target = $region29
    $region28: #{tpu_custom_call.1} parent=1 // pred_region
      %92 = dma.done [#allocation6], 2048
    $region29: #{tpu_custom_call.1} parent=1 // pred_fallthru
      _
    // Predicated region
    $region30: #{tpu_custom_call.1} parent=1 // pred_check
      _
    $region31: #{tpu_custom_call.1} parent=1 // pred_check_branch
      %94 = sbr.rel (0) target = $region33
    $region32: #{tpu_custom_call.1} parent=1 // pred_region
      %95 = dma.done [#allocation6], 256
    $region33: #{tpu_custom_call.1} parent=1 // pred_fallthru
      _
    // Predicated region
    $region34: #{tpu_custom_call.1} parent=1 // pred_check
      _
    $region35: #{tpu_custom_call.1} parent=1 // pred_check_branch
      %97 = sbr.rel (0) target = $region37
    $region36: #{tpu_custom_call.1} parent=1 // pred_region
      %98 = dma.done [#allocation9], 256
    $region37: #{tpu_custom_call.1} parent=1 // pred_fallthru
      _
    %v100 = vld [vmem:[#allocation2] sm:$0x1]
    %v101 = vld [vmem:[#allocation7] sm:$0xf]
    %v102 = vld [vmem:[#allocation7 + $0x4] sm:$0xf]
    %v103 = vld [vmem:[#allocation7 + $0x8] sm:$0xf]
    %v104 = vld [vmem:[#allocation7 + $0xc] sm:$0xf]
    %v109 = vunpack.c.l.b16 %v101
    %v110 = vunpack.c.l.b16 %v102
    %v111 = vunpack.c.l.b16 %v103
    %v112 = vunpack.c.l.b16 %v104
    %v113 = vpack.c.b16 %v110, %v109
    %v114 = vpack.c.b16 %v112, %v111
    %vm117 = vcmask 261120
    %v119 = vsel %vm117, %v100, 0
    %121 = vmatprep.subr.bf16.mxu0 0
    %122 = vmatpush1.bf16.msra.mxu0 %v113
    %123 = vmatprep.subr.bf16.mxu0 0
    %124 = vmatpush1.bf16.msra.mxu0 %v114
    %125 = vmatprep.subr.bf16.mxu0 0
    %126 = vmatpush1.bf16.msra.mxu0 0
    %127 = vmatprep.subr.bf16.mxu0 0
    %128 = vmatpush1.bf16.msra.mxu0 0
    %129 = vmatprep.subr.bf16.mxu0 0
    %130 = vmatpush1.bf16.msra.mxu0 0
    %131 = vmatprep.subr.bf16.mxu0 0
    %132 = vmatpush1.bf16.msra.mxu0 0
    %133 = vmatprep.subr.bf16.mxu0 0
    %134 = vmatpush1.bf16.msra.mxu0 0
    %135 = vmatprep.subr.bf16.mxu0 0
    %136 = vmatpush1.bf16.msra.mxu0 0
    %137 = vmatprep.subr.bf16.mxu0 0
    %138 = vmatpush1.bf16.msra.mxu0 0
    %139 = vmatprep.subr.bf16.mxu0 0
    %140 = vmatpush1.bf16.msra.mxu0 0
    %141 = vmatprep.subr.bf16.mxu0 0
    %142 = vmatpush1.bf16.msra.mxu0 0
    %143 = vmatprep.subr.bf16.mxu0 0
    %144 = vmatpush1.bf16.msra.mxu0 0
    %145 = vmatprep.subr.bf16.mxu0 0
    %146 = vmatpush1.bf16.msra.mxu0 0
    %147 = vmatprep.subr.bf16.mxu0 0
    %148 = vmatpush1.bf16.msra.mxu0 0
    %149 = vmatprep.subr.bf16.mxu0 0
    %150 = vmatpush1.bf16.msra.mxu0 0
    %151 = vmatprep.subr.bf16.mxu0 0
    %152 = vmatpush1.bf16.msra.mxu0 0
    %153 = vmatprep.mubr.bf16.mxu0 0
    %154 = vmatmul.mubr.bf16.gmra.mrb[0].mxu0 %v119
    %v155 = vpop.f32.mrb[0].mxu0
    %v156 = vadd.f32 0.0, %v155
    %v157 = vpop.f32.mrb[0].mxu0
    %v158 = vpop.f32.mrb[0].mxu0
    %v159 = vpop.f32.mrb[0].mxu0
    %160 = vdwg.mxu0
    %v161 = vld [vmem:[#allocation5] sm:$0xf]
    %v162 = vld [vmem:[#allocation5 + $0x4] sm:$0xf]
    %v163 = vld [vmem:[#allocation5 + $0x8] sm:$0xf]
    %v164 = vld [vmem:[#allocation5 + $0xc] sm:$0xf]
    %v165 = vld [vmem:[#allocation5 + $0x10] sm:$0xf]
    %v166 = vld [vmem:[#allocation5 + $0x14] sm:$0xf]
    %v167 = vld [vmem:[#allocation5 + $0x18] sm:$0xf]
    %v168 = vld [vmem:[#allocation5 + $0x1c] sm:$0xf]
    %v169 = vld [vmem:[#allocation5 + $0x20] sm:$0xf]
    %v170 = vld [vmem:[#allocation5 + $0x24] sm:$0xf]
    %v171 = vld [vmem:[#allocation5 + $0x28] sm:$0xf]
    %v172 = vld [vmem:[#allocation5 + $0x2c] sm:$0xf]
    %v173 = vld [vmem:[#allocation5 + $0x30] sm:$0xf]
    %v174 = vld [vmem:[#allocation5 + $0x34] sm:$0xf]
    %v175 = vld [vmem:[#allocation5 + $0x38] sm:$0xf]
    %v176 = vld [vmem:[#allocation5 + $0x3c] sm:$0xf]
    %v177 = vld [vmem:[#allocation5 + $0x40] sm:$0xf]
    %v178 = vld [vmem:[#allocation5 + $0x44] sm:$0xf]
    %v179 = vld [vmem:[#allocation5 + $0x48] sm:$0xf]
    %v180 = vld [vmem:[#allocation5 + $0x4c] sm:$0xf]
    %v181 = vld [vmem:[#allocation5 + $0x50] sm:$0xf]
    %v182 = vld [vmem:[#allocation5 + $0x54] sm:$0xf]
    %v183 = vld [vmem:[#allocation5 + $0x58] sm:$0xf]
    %v184 = vld [vmem:[#allocation5 + $0x5c] sm:$0xf]
    %v185 = vld [vmem:[#allocation5 + $0x60] sm:$0xf]
    %v186 = vld [vmem:[#allocation5 + $0x64] sm:$0xf]
    %v187 = vld [vmem:[#allocation5 + $0x68] sm:$0xf]
    %v188 = vld [vmem:[#allocation5 + $0x6c] sm:$0xf]
    %v189 = vld [vmem:[#allocation5 + $0x70] sm:$0xf]
    %v190 = vld [vmem:[#allocation5 + $0x74] sm:$0xf]
    %v191 = vld [vmem:[#allocation5 + $0x78] sm:$0xf]
    %v192 = vld [vmem:[#allocation5 + $0x7c] sm:$0xf]
    %v193 = vld [vmem:[#allocation8] sm:$0xf]
    %v194 = vld [vmem:[#allocation8 + $0x4] sm:$0xf]
    %v195 = vld [vmem:[#allocation8 + $0x8] sm:$0xf]
    %v196 = vld [vmem:[#allocation8 + $0xc] sm:$0xf]
    %v229 = vunpack.c.l.b16 %v161
    %v230 = vunpack.c.l.b16 %v162
    %v231 = vunpack.c.l.b16 %v163
    %v232 = vunpack.c.l.b16 %v164
    %v233 = vunpack.c.l.b16 %v165
    %v234 = vunpack.c.l.b16 %v166
    %v235 = vunpack.c.l.b16 %v167
    %v236 = vunpack.c.l.b16 %v168
    %v237 = vunpack.c.l.b16 %v169
    %v238 = vunpack.c.l.b16 %v170
    %v239 = vunpack.c.l.b16 %v171
    %v240 = vunpack.c.l.b16 %v172
    %v241 = vunpack.c.l.b16 %v173
    %v242 = vunpack.c.l.b16 %v174
    %v243 = vunpack.c.l.b16 %v175
    %v244 = vunpack.c.l.b16 %v176
    %v245 = vunpack.c.l.b16 %v177
    %v246 = vunpack.c.l.b16 %v178
    %v247 = vunpack.c.l.b16 %v179
    %v248 = vunpack.c.l.b16 %v180
    %v249 = vunpack.c.l.b16 %v181
    %v250 = vunpack.c.l.b16 %v182
    %v251 = vunpack.c.l.b16 %v183
    %v252 = vunpack.c.l.b16 %v184
    %v253 = vunpack.c.l.b16 %v185
    %v254 = vunpack.c.l.b16 %v186
    %v255 = vunpack.c.l.b16 %v187
    %v256 = vunpack.c.l.b16 %v188
    %v257 = vunpack.c.l.b16 %v189
    %v258 = vunpack.c.l.b16 %v190
    %v259 = vunpack.c.l.b16 %v191
    %v260 = vunpack.c.l.b16 %v192
    %v261 = vpack.c.b16 %v230, %v229
    %v262 = vpack.c.b16 %v232, %v231
    %v263 = vpack.c.b16 %v234, %v233
    %v264 = vpack.c.b16 %v236, %v235
    %v265 = vpack.c.b16 %v238, %v237
    %v266 = vpack.c.b16 %v240, %v239
    %v267 = vpack.c.b16 %v242, %v241
    %v268 = vpack.c.b16 %v244, %v243
    %v269 = vpack.c.b16 %v246, %v245
    %v270 = vpack.c.b16 %v248, %v247
    %v271 = vpack.c.b16 %v250, %v249
    %v272 = vpack.c.b16 %v252, %v251
    %v273 = vpack.c.b16 %v254, %v253
    %v274 = vpack.c.b16 %v256, %v255
    %v275 = vpack.c.b16 %v258, %v257
    %v276 = vpack.c.b16 %v260, %v259
    %v281 = vunpack.c.l.b16 %v193
    %v282 = vunpack.c.l.b16 %v194
    %v283 = vunpack.c.l.b16 %v195
    %v284 = vunpack.c.l.b16 %v196
    %v285 = vpack.c.b16 %v282, %v281
    %v286 = vpack.c.b16 %v284, %v283
    %v290 = vsel %vm117, %v261, 0
    %v293 = vsel %vm117, %v262, 0
    %v296 = vsel %vm117, %v263, 0
    %v299 = vsel %vm117, %v264, 0
    %v302 = vsel %vm117, %v265, 0
    %v305 = vsel %vm117, %v266, 0
    %v308 = vsel %vm117, %v267, 0
    %v311 = vsel %vm117, %v268, 0
    %v314 = vsel %vm117, %v269, 0
    %v317 = vsel %vm117, %v270, 0
    %v320 = vsel %vm117, %v271, 0
    %v323 = vsel %vm117, %v272, 0
    %v326 = vsel %vm117, %v273, 0
    %v329 = vsel %vm117, %v274, 0
    %v332 = vsel %vm117, %v275, 0
    %v335 = vsel %vm117, %v276, 0
    %337 = vmatprep.subr.bf16.mxu0 0
    %338 = vmatpush1.bf16.msra.mxu0 %v285
    %339 = vmatprep.subr.bf16.mxu0 0
    %340 = vmatpush1.bf16.msra.mxu0 %v286
    %341 = vmatprep.subr.bf16.mxu0 0
    %342 = vmatpush1.bf16.msra.mxu0 0
    %343 = vmatprep.subr.bf16.mxu0 0
    %344 = vmatpush1.bf16.msra.mxu0 0
    %345 = vmatprep.subr.bf16.mxu0 0
    %346 = vmatpush1.bf16.msra.mxu0 0
    %347 = vmatprep.subr.bf16.mxu0 0
    %348 = vmatpush1.bf16.msra.mxu0 0
    %349 = vmatprep.subr.bf16.mxu0 0
    %350 = vmatpush1.bf16.msra.mxu0 0
    %351 = vmatprep.subr.bf16.mxu0 0
    %352 = vmatpush1.bf16.msra.mxu0 0
    %353 = vmatprep.subr.bf16.mxu0 0
    %354 = vmatpush1.bf16.msra.mxu0 0
    %355 = vmatprep.subr.bf16.mxu0 0
    %356 = vmatpush1.bf16.msra.mxu0 0
    %357 = vmatprep.subr.bf16.mxu0 0
    %358 = vmatpush1.bf16.msra.mxu0 0
    %359 = vmatprep.subr.bf16.mxu0 0
    %360 = vmatpush1.bf16.msra.mxu0 0
    %361 = vmatprep.subr.bf16.mxu0 0
    %362 = vmatpush1.bf16.msra.mxu0 0
    %363 = vmatprep.subr.bf16.mxu0 0
    %364 = vmatpush1.bf16.msra.mxu0 0
    %365 = vmatprep.subr.bf16.mxu0 0
    %366 = vmatpush1.bf16.msra.mxu0 0
    %367 = vmatprep.subr.bf16.mxu0 0
    %368 = vmatpush1.bf16.msra.mxu0 0
    %369 = vmatprep.mubr.bf16.mxu0 0
    %370 = vmatmul.mubr.bf16.gmra.mrb[0].mxu0 %v290
    %v371 = vpop.f32.mrb[0].mxu0
    %v372 = vadd.f32 0.0, %v371
    %v373 = vpop.f32.mrb[0].mxu0
    %v374 = vpop.f32.mrb[0].mxu0
    %v375 = vadd.f32 0.0, %v374
    %v376 = vpop.f32.mrb[0].mxu0
    %377 = vmatprep.mubr.bf16.mxu0 0
    %378 = vmatmul.mubr.bf16.gmra.mrb[0].mxu0 %v293
    %v379 = vpop.f32.mrb[0].mxu0
    %v380 = vadd.f32 0.0, %v379
    %v381 = vpop.f32.mrb[0].mxu0
    %v382 = vpop.f32.mrb[0].mxu0
    %v383 = vadd.f32 0.0, %v382
    %v384 = vpop.f32.mrb[0].mxu0
    %385 = vmatprep.mubr.bf16.mxu0 0
    %386 = vmatmul.mubr.bf16.gmra.mrb[0].mxu0 %v296
    %v387 = vpop.f32.mrb[0].mxu0
    %v388 = vadd.f32 0.0, %v387
    %v389 = vpop.f32.mrb[0].mxu0
    %v390 = vpop.f32.mrb[0].mxu0
    %v391 = vadd.f32 0.0, %v390
    %v392 = vpop.f32.mrb[0].mxu0
    %393 = vmatprep.mubr.bf16.mxu0 0
    %394 = vmatmul.mubr.bf16.gmra.mrb[0].mxu0 %v299
    %v395 = vpop.f32.mrb[0].mxu0
    %v396 = vadd.f32 0.0, %v395
    %v397 = vpop.f32.mrb[0].mxu0
    %v398 = vpop.f32.mrb[0].mxu0
    %v399 = vadd.f32 0.0, %v398
    %v400 = vpop.f32.mrb[0].mxu0
    %401 = vmatprep.mubr.bf16.mxu0 0
    %402 = vmatmul.mubr.bf16.gmra.mrb[0].mxu0 %v302
    %v403 = vpop.f32.mrb[0].mxu0
    %v404 = vadd.f32 0.0, %v403
    %v405 = vpop.f32.mrb[0].mxu0
    %v406 = vpop.f32.mrb[0].mxu0
    %v407 = vadd.f32 0.0, %v406
    %v408 = vpop.f32.mrb[0].mxu0
    %409 = vmatprep.mubr.bf16.mxu0 0
    %410 = vmatmul.mubr.bf16.gmra.mrb[0].mxu0 %v305
    %v411 = vpop.f32.mrb[0].mxu0
    %v412 = vadd.f32 0.0, %v411
    %v413 = vpop.f32.mrb[0].mxu0
    %v414 = vpop.f32.mrb[0].mxu0
    %v415 = vadd.f32 0.0, %v414
    %v416 = vpop.f32.mrb[0].mxu0
    %417 = vmatprep.mubr.bf16.mxu0 0
    %418 = vmatmul.mubr.bf16.gmra.mrb[0].mxu0 %v308
    %v419 = vpop.f32.mrb[0].mxu0
    %v420 = vadd.f32 0.0, %v419
    %v421 = vpop.f32.mrb[0].mxu0
    %v422 = vpop.f32.mrb[0].mxu0
    %v423 = vadd.f32 0.0, %v422
    %v424 = vpop.f32.mrb[0].mxu0
    %425 = vmatprep.mubr.bf16.mxu0 0
    %426 = vmatmul.mubr.bf16.gmra.mrb[0].mxu0 %v311
    %v427 = vpop.f32.mrb[0].mxu0
    %v428 = vadd.f32 0.0, %v427
    %v429 = vpop.f32.mrb[0].mxu0
    %v430 = vpop.f32.mrb[0].mxu0
    %v431 = vadd.f32 0.0, %v430
    %v432 = vpop.f32.mrb[0].mxu0
    %433 = vmatprep.mubr.bf16.mxu0 0
    %434 = vmatmul.mubr.bf16.gmra.mrb[0].mxu0 %v314
    %v435 = vpop.f32.mrb[0].mxu0
    %v436 = vadd.f32 0.0, %v435
    %v437 = vpop.f32.mrb[0].mxu0
    %v438 = vpop.f32.mrb[0].mxu0
    %v439 = vadd.f32 0.0, %v438
    %v440 = vpop.f32.mrb[0].mxu0
    %441 = vmatprep.mubr.bf16.mxu0 0
    %442 = vmatmul.mubr.bf16.gmra.mrb[0].mxu0 %v317
    %v443 = vpop.f32.mrb[0].mxu0
    %v444 = vadd.f32 0.0, %v443
    %v445 = vpop.f32.mrb[0].mxu0
    %v446 = vpop.f32.mrb[0].mxu0
    %v447 = vadd.f32 0.0, %v446
    %v448 = vpop.f32.mrb[0].mxu0
    %449 = vmatprep.mubr.bf16.mxu0 0
    %450 = vmatmul.mubr.bf16.gmra.mrb[0].mxu0 %v320
    %v451 = vpop.f32.mrb[0].mxu0
    %v452 = vadd.f32 0.0, %v451
    %v453 = vpop.f32.mrb[0].mxu0
    %v454 = vpop.f32.mrb[0].mxu0
    %v455 = vadd.f32 0.0, %v454
    %v456 = vpop.f32.mrb[0].mxu0
    %457 = vmatprep.mubr.bf16.mxu0 0
    %458 = vmatmul.mubr.bf16.gmra.mrb[0].mxu0 %v323
    %v459 = vpop.f32.mrb[0].mxu0
    %v460 = vadd.f32 0.0, %v459
    %v461 = vpop.f32.mrb[0].mxu0
    %v462 = vpop.f32.mrb[0].mxu0
    %v463 = vadd.f32 0.0, %v462
    %v464 = vpop.f32.mrb[0].mxu0
    %465 = vmatprep.mubr.bf16.mxu0 0
    %466 = vmatmul.mubr.bf16.gmra.mrb[0].mxu0 %v326
    %v467 = vpop.f32.mrb[0].mxu0
    %v468 = vadd.f32 0.0, %v467
    %v469 = vpop.f32.mrb[0].mxu0
    %v470 = vpop.f32.mrb[0].mxu0
    %v471 = vadd.f32 0.0, %v470
    %v472 = vpop.f32.mrb[0].mxu0
    %473 = vmatprep.mubr.bf16.mxu0 0
    %474 = vmatmul.mubr.bf16.gmra.mrb[0].mxu0 %v329
    %v475 = vpop.f32.mrb[0].mxu0
    %v476 = vadd.f32 0.0, %v475
    %v477 = vpop.f32.mrb[0].mxu0
    %v478 = vpop.f32.mrb[0].mxu0
    %v479 = vadd.f32 0.0, %v478
    %v480 = vpop.f32.mrb[0].mxu0
    %481 = vmatprep.mubr.bf16.mxu0 0
    %482 = vmatmul.mubr.bf16.gmra.mrb[0].mxu0 %v332
    %v483 = vpop.f32.mrb[0].mxu0
    %v484 = vadd.f32 0.0, %v483
    %v485 = vpop.f32.mrb[0].mxu0
    %v486 = vpop.f32.mrb[0].mxu0
    %v487 = vadd.f32 0.0, %v486
    %v488 = vpop.f32.mrb[0].mxu0
    %489 = vmatprep.mubr.bf16.mxu0 0
    %490 = vmatmul.mubr.bf16.gmra.mrb[0].mxu0 %v335
    %v491 = vpop.f32.mrb[0].mxu0
    %v492 = vadd.f32 0.0, %v491
    %v493 = vpop.f32.mrb[0].mxu0
    %v494 = vpop.f32.mrb[0].mxu0
    %v495 = vadd.f32 0.0, %v494
    %v496 = vpop.f32.mrb[0].mxu0
    %497 = vdwg.mxu0
    %v500 = vunpack.c.l.s4 1966171168
    %v501 = vunpack.c.0.s8 %v500
    %v502 = vlaneseq
    %v503 = vshrl.u32 %v502, 7
    %v504 = vsub.s32 %v501, %v503
    %v505 = vrot.slane %v156, %v504
    %v506 = vcombine.high %v505, %v505
    %v508 = vunpack.c.l.s4 1966171168
    %v509 = vunpack.c.0.s8 %v508
    %v510 = vlaneseq
    %v511 = vshrl.u32 %v510, 7
    %v512 = vsub.s32 %v509, %v511
    %v513 = vrot.slane %v505, %v512
    %v515 = vunpack.c.l.s4 1966171168
    %v516 = vunpack.c.0.s8 %v515
    %v517 = vlaneseq
    %v518 = vshrl.u32 %v517, 7
    %v519 = vsub.s32 %v516, %v518
    %v520 = vrot.slane %v506, %v519
    %v521 = vlaneseq
    %v522 = vshrl.u32 %v521, 7
    %v523 = vsub.s32 0, %v522
    %v524 = vrot.slane %v513, %v523
    %v525 = vlaneseq
    %v526 = vshrl.u32 %v525, 7
    %v527 = vsub.s32 0, %v526
    %v528 = vrot.slane %v520, %v527
    %v531 = vadd.f32 %v372, %v524
    %v532 = vadd.f32 %v375, %v524
    %v533 = vadd.f32 %v380, %v524
    %v534 = vadd.f32 %v383, %v524
    %v535 = vadd.f32 %v388, %v524
    %v536 = vadd.f32 %v391, %v524
    %v537 = vadd.f32 %v396, %v524
    %v538 = vadd.f32 %v399, %v524
    %v539 = vadd.f32 %v404, %v524
    %v540 = vadd.f32 %v407, %v524
    %v541 = vadd.f32 %v412, %v524
    %v542 = vadd.f32 %v415, %v524
    %v543 = vadd.f32 %v420, %v524
    %v544 = vadd.f32 %v423, %v524
    %v545 = vadd.f32 %v428, %v524
    %v546 = vadd.f32 %v431, %v524
    %v547 = vadd.f32 %v436, %v528
    %v548 = vadd.f32 %v439, %v528
    %v549 = vadd.f32 %v444, %v528
    %v550 = vadd.f32 %v447, %v528
    %v551 = vadd.f32 %v452, %v528
    %v552 = vadd.f32 %v455, %v528
    %v553 = vadd.f32 %v460, %v528
    %v554 = vadd.f32 %v463, %v528
    %v555 = vadd.f32 %v468, %v528
    %v556 = vadd.f32 %v471, %v528
    %v557 = vadd.f32 %v476, %v528
    %v558 = vadd.f32 %v479, %v528
    %v559 = vadd.f32 %v484, %v528
    %v560 = vadd.f32 %v487, %v528
    %v561 = vadd.f32 %v492, %v528
    %v562 = vadd.f32 %v495, %v528
    %v563 = vtanh.pop %v531
    %v564 = vtanh.pop %v532
    %v565 = vtanh.pop %v533
    %v566 = vtanh.pop %v534
    %v567 = vtanh.pop %v535
    %v568 = vtanh.pop %v536
    %v569 = vtanh.pop %v537
    %v570 = vtanh.pop %v538
    %v571 = vtanh.pop %v539
    %v572 = vtanh.pop %v540
    %v573 = vtanh.pop %v541
    %v574 = vtanh.pop %v542
    %v575 = vtanh.pop %v543
    %v576 = vtanh.pop %v544
    %v577 = vtanh.pop %v545
    %v578 = vtanh.pop %v546
    %v579 = vtanh.pop %v547
    %v580 = vtanh.pop %v548
    %v581 = vtanh.pop %v549
    %v582 = vtanh.pop %v550
    %v583 = vtanh.pop %v551
    %v584 = vtanh.pop %v552
    %v585 = vtanh.pop %v553
    %v586 = vtanh.pop %v554
    %v587 = vtanh.pop %v555
    %v588 = vtanh.pop %v556
    %v589 = vtanh.pop %v557
    %v590 = vtanh.pop %v558
    %v591 = vtanh.pop %v559
    %v592 = vtanh.pop %v560
    %v593 = vtanh.pop %v561
    %v594 = vtanh.pop %v562
    %v595 = vld [vmem:[%s4] sm:$0x1]
    %v597 = vlaneseq
    %v598 = vshrl.u32 %v597, 7
    %v599 = vsub.s32 0, %v598
    %v600 = vrot.slane %v595, %v599
    %v602 = vmul.f32 %v563, %v600
    %v603 = vmul.f32 %v564, %v600
    %v604 = vmul.f32 %v565, %v600
    %v605 = vmul.f32 %v566, %v600
    %v606 = vmul.f32 %v567, %v600
    %v607 = vmul.f32 %v568, %v600
    %v608 = vmul.f32 %v569, %v600
    %v609 = vmul.f32 %v570, %v600
    %v610 = vmul.f32 %v571, %v600
    %v611 = vmul.f32 %v572, %v600
    %v612 = vmul.f32 %v573, %v600
    %v613 = vmul.f32 %v574, %v600
    %v614 = vmul.f32 %v575, %v600
    %v615 = vmul.f32 %v576, %v600
    %v616 = vmul.f32 %v577, %v600
    %v617 = vmul.f32 %v578, %v600
    %v618 = vmul.f32 %v579, %v600
    %v619 = vmul.f32 %v580, %v600
    %v620 = vmul.f32 %v581, %v600
    %v621 = vmul.f32 %v582, %v600
    %v622 = vmul.f32 %v583, %v600
    %v623 = vmul.f32 %v584, %v600
    %v624 = vmul.f32 %v585, %v600
    %v625 = vmul.f32 %v586, %v600
    %v626 = vmul.f32 %v587, %v600
    %v627 = vmul.f32 %v588, %v600
    %v628 = vmul.f32 %v589, %v600
    %v629 = vmul.f32 %v590, %v600
    %v630 = vmul.f32 %v591, %v600
    %v631 = vmul.f32 %v592, %v600
    %v632 = vmul.f32 %v593, %v600
    %v633 = vmul.f32 %v594, %v600
    %v634 = vsel %vm117, %v602, 0.0
    %635 = vadd.xlane.f32.xlu0 %v634
    %v636 = vpop.xlane.xlu0 %635
    %v637 = vsel %vm117, %v603, 0.0
    %638 = vadd.xlane.f32.xlu0 %v637
    %v639 = vpop.xlane.xlu0 %638
    %v640 = vsel %vm117, %v604, 0.0
    %641 = vadd.xlane.f32.xlu0 %v640
    %v642 = vpop.xlane.xlu0 %641
    %v643 = vsel %vm117, %v605, 0.0
    %644 = vadd.xlane.f32.xlu0 %v643
    %v645 = vpop.xlane.xlu0 %644
    %v646 = vsel %vm117, %v606, 0.0
    %647 = vadd.xlane.f32.xlu0 %v646
    %v648 = vpop.xlane.xlu0 %647
    %v649 = vsel %vm117, %v607, 0.0
    %650 = vadd.xlane.f32.xlu0 %v649
    %v651 = vpop.xlane.xlu0 %650
    %v652 = vsel %vm117, %v608, 0.0
    %653 = vadd.xlane.f32.xlu0 %v652
    %v654 = vpop.xlane.xlu0 %653
    %v655 = vsel %vm117, %v609, 0.0
    %656 = vadd.xlane.f32.xlu0 %v655
    %v657 = vpop.xlane.xlu0 %656
    %v658 = vsel %vm117, %v610, 0.0
    %659 = vadd.xlane.f32.xlu0 %v658
    %v660 = vpop.xlane.xlu0 %659
    %v661 = vsel %vm117, %v611, 0.0
    %662 = vadd.xlane.f32.xlu0 %v661
    %v663 = vpop.xlane.xlu0 %662
    %v664 = vsel %vm117, %v612, 0.0
    %665 = vadd.xlane.f32.xlu0 %v664
    %v666 = vpop.xlane.xlu0 %665
    %v667 = vsel %vm117, %v613, 0.0
    %668 = vadd.xlane.f32.xlu0 %v667
    %v669 = vpop.xlane.xlu0 %668
    %v670 = vsel %vm117, %v614, 0.0
    %671 = vadd.xlane.f32.xlu0 %v670
    %v672 = vpop.xlane.xlu0 %671
    %v673 = vsel %vm117, %v615, 0.0
    %674 = vadd.xlane.f32.xlu0 %v673
    %v675 = vpop.xlane.xlu0 %674
    %v676 = vsel %vm117, %v616, 0.0
    %677 = vadd.xlane.f32.xlu0 %v676
    %v678 = vpop.xlane.xlu0 %677
    %v679 = vsel %vm117, %v617, 0.0
    %680 = vadd.xlane.f32.xlu0 %v679
    %v681 = vpop.xlane.xlu0 %680
    %v682 = vsel %vm117, %v618, 0.0
    %683 = vadd.xlane.f32.xlu0 %v682
    %v684 = vpop.xlane.xlu0 %683
    %v685 = vsel %vm117, %v619, 0.0
    %686 = vadd.xlane.f32.xlu0 %v685
    %v687 = vpop.xlane.xlu0 %686
    %v688 = vsel %vm117, %v620, 0.0
    %689 = vadd.xlane.f32.xlu0 %v688
    %v690 = vpop.xlane.xlu0 %689
    %v691 = vsel %vm117, %v621, 0.0
    %692 = vadd.xlane.f32.xlu0 %v691
    %v693 = vpop.xlane.xlu0 %692
    %v694 = vsel %vm117, %v622, 0.0
    %695 = vadd.xlane.f32.xlu0 %v694
    %v696 = vpop.xlane.xlu0 %695
    %v697 = vsel %vm117, %v623, 0.0
    %698 = vadd.xlane.f32.xlu0 %v697
    %v699 = vpop.xlane.xlu0 %698
    %v700 = vsel %vm117, %v624, 0.0
    %701 = vadd.xlane.f32.xlu0 %v700
    %v702 = vpop.xlane.xlu0 %701
    %v703 = vsel %vm117, %v625, 0.0
    %704 = vadd.xlane.f32.xlu0 %v703
    %v705 = vpop.xlane.xlu0 %704
    %v706 = vsel %vm117, %v626, 0.0
    %707 = vadd.xlane.f32.xlu0 %v706
    %v708 = vpop.xlane.xlu0 %707
    %v709 = vsel %vm117, %v627, 0.0
    %710 = vadd.xlane.f32.xlu0 %v709
    %v711 = vpop.xlane.xlu0 %710
    %v712 = vsel %vm117, %v628, 0.0
    %713 = vadd.xlane.f32.xlu0 %v712
    %v714 = vpop.xlane.xlu0 %713
    %v715 = vsel %vm117, %v629, 0.0
    %716 = vadd.xlane.f32.xlu0 %v715
    %v717 = vpop.xlane.xlu0 %716
    %v718 = vsel %vm117, %v630, 0.0
    %719 = vadd.xlane.f32.xlu0 %v718
    %v720 = vpop.xlane.xlu0 %719
    %v721 = vsel %vm117, %v631, 0.0
    %722 = vadd.xlane.f32.xlu0 %v721
    %v723 = vpop.xlane.xlu0 %722
    %v724 = vsel %vm117, %v632, 0.0
    %725 = vadd.xlane.f32.xlu0 %v724
    %v726 = vpop.xlane.xlu0 %725
    %v727 = vsel %vm117, %v633, 0.0
    %728 = vadd.xlane.f32.xlu0 %v727
    %v729 = vpop.xlane.xlu0 %728
    %v762 = vlaneseq
    %v763 = vand.u32 %v762, 127
    %v764 = vlaneseq
    %v765 = vshrl.u32 %v764, 7
    %v766 = vsub.s32 %v763, %v765
    %v767 = vrot.slane %v636, %v766
    %v768 = vadd.s32 %v763, 4294967288
    %v769 = vlaneseq
    %v770 = vshrl.u32 %v769, 7
    %v771 = vsub.s32 %v768, %v770
    %v772 = vrot.slane %v639, %v771
    %vm773 = vcmask 130112
    %v774 = vsel %vm773, %v772, %v767
    %v775 = vadd.s32 %v763, 4294967280
    %v776 = vlaneseq
    %v777 = vshrl.u32 %v776, 7
    %v778 = vsub.s32 %v775, %v777
    %v779 = vrot.slane %v642, %v778
    %vm780 = vcmask 195712
    %v781 = vsel %vm780, %v779, %v774
    %v782 = vadd.s32 %v763, 4294967272
    %v783 = vlaneseq
    %v784 = vshrl.u32 %v783, 7
    %v785 = vsub.s32 %v782, %v784
    %v786 = vrot.slane %v645, %v785
    %vm787 = vcmask 261312
    %v788 = vsel %vm787, %v786, %v781
    %v789 = vadd.s32 %v763, 4294967264
    %v790 = vlaneseq
    %v791 = vshrl.u32 %v790, 7
    %v792 = vsub.s32 %v789, %v791
    %v793 = vrot.slane %v648, %v792
    %vm794 = vcmask 326912
    %v795 = vsel %vm794, %v793, %v788
    %v796 = vadd.s32 %v763, 4294967256
    %v797 = vlaneseq
    %v798 = vshrl.u32 %v797, 7
    %v799 = vsub.s32 %v796, %v798
    %v800 = vrot.slane %v651, %v799
    %vm801 = vcmask 392512
    %v802 = vsel %vm801, %v800, %v795
    %v803 = vadd.s32 %v763, 4294967248
    %v804 = vlaneseq
    %v805 = vshrl.u32 %v804, 7
    %v806 = vsub.s32 %v803, %v805
    %v807 = vrot.slane %v654, %v806
    %vm808 = vcmask 458112
    %v809 = vsel %vm808, %v807, %v802
    %v810 = vadd.s32 %v763, 4294967240
    %v811 = vlaneseq
    %v812 = vshrl.u32 %v811, 7
    %v813 = vsub.s32 %v810, %v812
    %v814 = vrot.slane %v657, %v813
    %vm815 = vcmask 523712
    %v816 = vsel %vm815, %v814, %v809
    %v817 = vadd.s32 %v763, 4294967232
    %v818 = vlaneseq
    %v819 = vshrl.u32 %v818, 7
    %v820 = vsub.s32 %v817, %v819
    %v821 = vrot.slane %v660, %v820
    %vm822 = vcmask 589312
    %v823 = vsel %vm822, %v821, %v816
    %v824 = vadd.s32 %v763, 4294967224
    %v825 = vlaneseq
    %v826 = vshrl.u32 %v825, 7
    %v827 = vsub.s32 %v824, %v826
    %v828 = vrot.slane %v663, %v827
    %vm829 = vcmask 654912
    %v830 = vsel %vm829, %v828, %v823
    %v831 = vadd.s32 %v763, 4294967216
    %v832 = vlaneseq
    %v833 = vshrl.u32 %v832, 7
    %v834 = vsub.s32 %v831, %v833
    %v835 = vrot.slane %v666, %v834
    %vm836 = vcmask 720512
    %v837 = vsel %vm836, %v835, %v830
    %v838 = vadd.s32 %v763, 4294967208
    %v839 = vlaneseq
    %v840 = vshrl.u32 %v839, 7
    %v841 = vsub.s32 %v838, %v840
    %v842 = vrot.slane %v669, %v841
    %vm843 = vcmask 786112
    %v844 = vsel %vm843, %v842, %v837
    %v845 = vadd.s32 %v763, 4294967200
    %v846 = vlaneseq
    %v847 = vshrl.u32 %v846, 7
    %v848 = vsub.s32 %v845, %v847
    %v849 = vrot.slane %v672, %v848
    %vm850 = vcmask 851712
    %v851 = vsel %vm850, %v849, %v844
    %v852 = vadd.s32 %v763, 4294967192
    %v853 = vlaneseq
    %v854 = vshrl.u32 %v853, 7
    %v855 = vsub.s32 %v852, %v854
    %v856 = vrot.slane %v675, %v855
    %vm857 = vcmask 917312
    %v858 = vsel %vm857, %v856, %v851
    %v859 = vadd.s32 %v763, 4294967184
    %v860 = vlaneseq
    %v861 = vshrl.u32 %v860, 7
    %v862 = vsub.s32 %v859, %v861
    %v863 = vrot.slane %v678, %v862
    %vm864 = vcmask 982912
    %v865 = vsel %vm864, %v863, %v858
    %v866 = vadd.s32 %v763, 4294967176
    %v867 = vlaneseq
    %v868 = vshrl.u32 %v867, 7
    %v869 = vsub.s32 %v866, %v868
    %v870 = vrot.slane %v681, %v869
    %vm871 = vcmask 1048512
    %v872 = vsel %vm871, %v870, %v865
    %v873 = vlaneseq
    %v874 = vshrl.u32 %v873, 7
    %v875 = vsub.s32 %v763, %v874
    %v876 = vrot.slane %v684, %v875
    %v877 = vlaneseq
    %v878 = vshrl.u32 %v877, 7
    %v879 = vsub.s32 %v768, %v878
    %v880 = vrot.slane %v687, %v879
    %v881 = vsel %vm773, %v880, %v876
    %v882 = vlaneseq
    %v883 = vshrl.u32 %v882, 7
    %v884 = vsub.s32 %v775, %v883
    %v885 = vrot.slane %v690, %v884
    %v886 = vsel %vm780, %v885, %v881
    %v887 = vlaneseq
    %v888 = vshrl.u32 %v887, 7
    %v889 = vsub.s32 %v782, %v888
    %v890 = vrot.slane %v693, %v889
    %v891 = vsel %vm787, %v890, %v886
    %v892 = vlaneseq
    %v893 = vshrl.u32 %v892, 7
    %v894 = vsub.s32 %v789, %v893
    %v895 = vrot.slane %v696, %v894
    %v896 = vsel %vm794, %v895, %v891
    %v897 = vlaneseq
    %v898 = vshrl.u32 %v897, 7
    %v899 = vsub.s32 %v796, %v898
    %v900 = vrot.slane %v699, %v899
    %v901 = vsel %vm801, %v900, %v896
    %v902 = vlaneseq
    %v903 = vshrl.u32 %v902, 7
    %v904 = vsub.s32 %v803, %v903
    %v905 = vrot.slane %v702, %v904
    %v906 = vsel %vm808, %v905, %v901
    %v907 = vlaneseq
    %v908 = vshrl.u32 %v907, 7
    %v909 = vsub.s32 %v810, %v908
    %v910 = vrot.slane %v705, %v909
    %v911 = vsel %vm815, %v910, %v906
    %v912 = vlaneseq
    %v913 = vshrl.u32 %v912, 7
    %v914 = vsub.s32 %v817, %v913
    %v915 = vrot.slane %v708, %v914
    %v916 = vsel %vm822, %v915, %v911
    %v917 = vlaneseq
    %v918 = vshrl.u32 %v917, 7
    %v919 = vsub.s32 %v824, %v918
    %v920 = vrot.slane %v711, %v919
    %v921 = vsel %vm829, %v920, %v916
    %v922 = vlaneseq
    %v923 = vshrl.u32 %v922, 7
    %v924 = vsub.s32 %v831, %v923
    %v925 = vrot.slane %v714, %v924
    %v926 = vsel %vm836, %v925, %v921
    %v927 = vlaneseq
    %v928 = vshrl.u32 %v927, 7
    %v929 = vsub.s32 %v838, %v928
    %v930 = vrot.slane %v717, %v929
    %v931 = vsel %vm843, %v930, %v926
    %v932 = vlaneseq
    %v933 = vshrl.u32 %v932, 7
    %v934 = vsub.s32 %v845, %v933
    %v935 = vrot.slane %v720, %v934
    %v936 = vsel %vm850, %v935, %v931
    %v937 = vlaneseq
    %v938 = vshrl.u32 %v937, 7
    %v939 = vsub.s32 %v852, %v938
    %v940 = vrot.slane %v723, %v939
    %v941 = vsel %vm857, %v940, %v936
    %v942 = vlaneseq
    %v943 = vshrl.u32 %v942, 7
    %v944 = vsub.s32 %v859, %v943
    %v945 = vrot.slane %v726, %v944
    %v946 = vsel %vm864, %v945, %v941
    %v947 = vlaneseq
    %v948 = vshrl.u32 %v947, 7
    %v949 = vsub.s32 %v866, %v948
    %v950 = vrot.slane %v729, %v949
    %v951 = vsel %vm871, %v950, %v946
    %vm952 = vcmask 1041409
    %v953 = vsel %vm952, %v951, %v872
    %s955 = smul.u32 0, 2
    %s956 = scalar_lea.vmem [#allocation10], %s955
    %957 = vst [vmem:[%s956] sm:$0x3] %v953
    %p958 = scmp.eq.s32.totalorder 0, 0
    // Predicated region
    $region38: #{tpu_custom_call.1} parent=1 // pred_check
      %p959 = pneg %p958
    $region39: #{tpu_custom_call.1} parent=1 // pred_check_branch
      %961 = sbr.rel (%p959) target = $region41
    $region40: #{tpu_custom_call.1} parent=1 // pred_region
      %v962 = vld [vmem:[#allocation10] sm:$0x3]
      %vm963 = vcmp.lt.s32.totalorder %v763, 8
      %v964 = vsel %vm963, %v962, -3.4028235e+38
      %vm965 = vcmask 1041408
      %v966 = vsel %vm965, %v964, -inf
      %967 = vmax.xlane.f32.xlu0 %v966
      %v968 = vpop.xlane.xlu0 %967
      %v969 = vsub.f32 %v964, %v968
      %v970 = vmul.f32 %v969, 1.442695
      %v971 = vpow.pop %v970
      %v972 = vsel %vm963, %v971, 0.0
      %v973 = vsel %vm965, %v972, 0.0
      %974 = vadd.xlane.f32.xlu0 %v973
      %v975 = vpop.xlane.xlu0 %974
      %v976 = vadd.f32 %v975, 0.0
      %v977 = vrcp.pop %v976
      %v978 = vmul.f32 %v972, %v977
      %979 = vst [vmem:[#allocation10] sm:$0x3] %v978
    $region41: #{tpu_custom_call.1} parent=1 // pred_fallthru
      _
    // Predicated region
    $region42: #{tpu_custom_call.1} parent=1 // pred_check
      _
    $region43: #{tpu_custom_call.1} parent=1 // pred_check_branch
      %981 = sbr.rel (0) target = $region45
    $region44: #{tpu_custom_call.1} parent=1 // pred_region
      %s983 = ssub.s32 32, 32
      %984 = vsyncadd [#allocation4], %s983
      %s986 = sshll.u32 [#allocation10], 4
      %s987 = int_to_ptr.vmem [resolvable:$true] %s986
      %989 = dma.vmem_to_hbm [thread:$0]  %s987, 32, %s5, [#allocation4]
    $region45: #{tpu_custom_call.1} parent=1 // pred_fallthru
      _
    // Predicated region
    $region46: #{tpu_custom_call.1} parent=1 // pred_check
      _
    $region47: #{tpu_custom_call.1} parent=1 // pred_check_branch
      %991 = sbr.rel (0) target = $region49
    $region48: #{tpu_custom_call.1} parent=1 // pred_region
      %992 = dma.done [#allocation4], 32
    $region49: #{tpu_custom_call.1} parent=1 // pred_fallthru
      _
    %993 = vsyncpa [#allocation3], 1
    %994 = vsyncpa [#allocation6], 1
    %995 = vsyncpa [#allocation9], 1
    %996 = vsyncpa [#allocation4], 1

</llo_original>
